<compile_context>
chip_gen: v7x
topology: tpu7x:2x2x1
jax: 0.10.0
libtpu: 0.0.40
codegen_flags: <defaults>
</compile_context>

<pallas_src>
import functools
import math

import jax
import jax.numpy as jnp
from jax.experimental import pallas as pl
from jax.experimental.pallas import tpu as pltpu


# ----------------------------------------------------------------------------
# Buffer construction (glue; mirrors PyTorch __init__, tolerates odd d_model)
# ----------------------------------------------------------------------------
def make_positional_encoding(d_model: int, max_len: int,
                             dtype=jnp.float32) -> jnp.ndarray:
    """Returns pe of shape (max_len, d_model): even cols sin, odd cols cos."""
    position = jnp.arange(max_len, dtype=jnp.float32)[:, None]            # (L, 1)
    denominator = jnp.exp(
        jnp.arange(0, d_model, 2, dtype=jnp.float32) * (math.log(10000.0) / d_model)
    )                                                                      # (ceil(D/2),)
    angles = position / denominator                                        # (L, ceil(D/2))
    pe = jnp.zeros((max_len, d_model), jnp.float32)
    pe = pe.at[:, 0::2].set(jnp.sin(angles))
    pe = pe.at[:, 1::2].set(jnp.cos(angles[:, : d_model // 2]))
    return pe.astype(dtype)


# ----------------------------------------------------------------------------
# Pallas kernel: out[s, b*D + d] = x[s, b*D + d] + pe[s, d]
# ----------------------------------------------------------------------------
def _pe_add_kernel(x_ref, pe_ref, o_ref, *, n_batch: int, d_model: int):
    # x_ref / o_ref: (tile_s, n_batch * d_model);  pe_ref: (tile_s, d_model).
    # Broadcast over batch = B static lane-slice adds. Static slices are free
    # ref views; no cross-layout reshape/repeat needed and pe is loaded once.
    p = pe_ref[...]
    for b in range(n_batch):
        lo = b * d_model
        o_ref[:, lo:lo + d_model] = x_ref[:, lo:lo + d_model] + p


# ----------------------------------------------------------------------------
# Tiling / VMEM sizing helpers
# ----------------------------------------------------------------------------
def _round_up(x: int, m: int) -> int:
    return ((x + m - 1) // m) * m


def _vmem_budget_and_limit() -> tuple[int, int]:
    """Generation-aware (budget, scoped-limit) in bytes.

    v5e/v6e: 128 MiB VMEM  -> budget 32 MiB, limit 64 MiB.
    v7x:      64 MiB / TC  -> budget 16 MiB, limit 32 MiB.
    Unknown:  conservative v7x-safe fallback.
    """
    try:
        cap = int(pltpu.get_tpu_info().vmem_capacity_bytes)
    except Exception:
        cap = 64 * 1024 * 1024
    budget = min(cap // 4, 32 * 1024 * 1024)   # double-buffered working set target
    limit = min(cap // 2, 64 * 1024 * 1024)    # explicit scoped VMEM limit
    return budget, limit


def _sublane_multiple(itemsize: int) -> int:
    # f32 -> 8, bf16/f16 -> 16, int8/fp8 -> 32 (packed sublane tiles).
    return 8 * max(1, 4 // itemsize)


def _choose_tile_s(S: int, B: int, D: int, itemsize: int,
                   budget_bytes: int) -> int:
    """Largest sequence tile whose double-buffered working set (x + out + pe
    blocks, counting lane padding to 128) fits the budget."""
    bd_lanes = _round_up(B * D, 128)           # padded lane width of x/out blocks
    d_lanes = _round_up(D, 128)                # padded lane width of pe block
    per_row = (2 * bd_lanes + d_lanes) * itemsize * 2   # x+out+pe, double-buffered
    rows = budget_bytes // per_row
    sub = _sublane_multiple(itemsize)
    if rows >= S or S <= sub:
        return S                               # whole array fits (or too small to tile)
    return max(sub, (min(rows, S) // sub) * sub)


# ----------------------------------------------------------------------------
# Wrapper
# ----------------------------------------------------------------------------
def positional_encoding_forward(x: jnp.ndarray, pe: jnp.ndarray,
                                tile_s: int | None = None,
                                *, core_parallel: bool = False) -> jnp.ndarray:
    """x: (seq, batch, d_model); pe: (max_len, d_model). Returns x + pe[:seq]."""
    S, B, D = x.shape
    pe_slice = pe[:S].astype(x.dtype)          # (S, D), match x dtype (no promote)
    x2d = x.reshape(S, B * D)                  # free: trailing dims are contiguous

    itemsize = jnp.dtype(x.dtype).itemsize
    sub = _sublane_multiple(itemsize)
    budget, vmem_limit = _vmem_budget_and_limit()

    if tile_s is None:
        tile_s = _choose_tile_s(S, B, D, itemsize, budget)
    else:
        tile_s = min(int(tile_s), S)
        if tile_s != S:                        # round DOWN to a sublane multiple,
            tile_s = max(sub, (tile_s // sub) * sub)   # never whole-S fallback

    grid = (pl.cdiv(S, tile_s),)
    kernel = functools.partial(_pe_add_kernel, n_batch=B, d_model=D)
    semantics = (pltpu.CORE_PARALLEL,) if core_parallel else (pltpu.PARALLEL,)

    out2d = pl.pallas_call(
        kernel,
        out_shape=jax.ShapeDtypeStruct((S, B * D), x.dtype),
        grid=grid,
        in_specs=[
            # x tile: (tile_s, B*D) — dense sublanes (seq) and dense lanes when
            # B*D % 128 == 0.  If DMA were still exposed one could add
            # pipeline_mode=pl.Buffered(3), but this kernel is HBM-bound and
            # bigger tiles amortize better than deeper buffering.
            pl.BlockSpec((tile_s, B * D), lambda si: (si, 0)),
            # pe tile: (tile_s, D), read once per sequence tile (S*D total).
            pl.BlockSpec((tile_s, D), lambda si: (si, 0)),
        ],
        out_specs=pl.BlockSpec((tile_s, B * D), lambda si: (si, 0)),
        # In-place add: halves HBM allocation when the caller donates x.
        input_output_aliases={0: 0},
        compiler_params=pltpu.CompilerParams(
            dimension_semantics=semantics,
            vmem_limit_bytes=vmem_limit,
        ),
    )(x2d, pe_slice)
    return out2d.reshape(S, B, D)


# ----------------------------------------------------------------------------
# Demo / self-check
# ----------------------------------------------------------------------------
if __name__ == "__main__":
    # --- Small shape consistent with the module (single-block path) ---------
    d_model, max_len = 32, 16
    seq, batch = 8, 2
    pe = make_positional_encoding(d_model, max_len)
    x = jax.random.normal(jax.random.PRNGKey(0), (seq, batch, d_model),
                          dtype=jnp.float32)

    ref = x + pe[:seq][:, None, :]
    out = jax.block_until_ready(positional_encoding_forward(x, pe))
    assert out.shape == (seq, batch, d_model)
    assert jnp.allclose(out, ref, atol=1e-6, rtol=1e-6)

    # --- Multi-tile path: lane-dense (B*D % 128 == 0), batch=3 broadcast ----
    d2, L2, s2, b2 = 128, 64, 48, 3
    pe2 = make_positional_encoding(d2, L2)
    x2 = jax.random.normal(jax.random.PRNGKey(0), (s2, b2, d2), dtype=jnp.float32)

    ref2 = x2 + pe2[:s2][:, None, :]
    out2 = jax.block_until_ready(
        positional_encoding_forward(x2, pe2, tile_s=16))   # grid of 3 S-tiles
    assert out2.shape == (s2, b2, d2)
    assert jnp.allclose(out2, ref2, atol=1e-6, rtol=1e-6)

    print("KERNEL_OK")
</pallas_src>

<mosaic_0001>
module attributes {stable_mosaic.version = 11 : i64} {
  func.func @_pe_add_kernel(%arg0: i32, %arg1: memref<8x64xf32, #tpu.memory_space<vmem>>, %arg2: memref<8x32xf32, #tpu.memory_space<vmem>>, %arg3: memref<8x64xf32, #tpu.memory_space<vmem>>) attributes {dimension_semantics = [#tpu.dimension_semantics<parallel>], iteration_bounds = array<i64: 1>, scalar_prefetch = 0 : i64, scratch_operands = 0 : i64, tpu.core_type = #tpu.core_type<tc>, window_params = [{transform_indices = @transform_0, window_bounds = array<i64: 8, 64>}, {transform_indices = @transform_1, window_bounds = array<i64: 8, 32>}, {transform_indices = @transform_2, window_bounds = array<i64: 8, 64>}]} {
    %c0 = arith.constant 0 : index
    %c0_0 = arith.constant 0 : index
    %0 = vector.load %arg2[%c0, %c0_0] : memref<8x32xf32, #tpu.memory_space<vmem>>, vector<8x32xf32>
    %c0_1 = arith.constant 0 : index
    %c0_2 = arith.constant 0 : index
    %1 = vector.load %arg1[%c0_1, %c0_2] : memref<8x64xf32, #tpu.memory_space<vmem>>, vector<8x32xf32>
    %2 = arith.addf %1, %0 : vector<8x32xf32>
    %c0_3 = arith.constant 0 : index
    %c0_4 = arith.constant 0 : index
    %3 = vector.load %arg3[%c0_3, %c0_4] : memref<8x64xf32, #tpu.memory_space<vmem>>, vector<8x32xf32>
    tpu.vector_store %arg3[%c0_3, %c0_4], %2 {strides = array<i32>} : memref<8x64xf32, #tpu.memory_space<vmem>>, vector<8x32xf32>,
    %c0_5 = arith.constant 0 : index
    %c32 = arith.constant 32 : index
    %4 = vector.load %arg1[%c0_5, %c32] : memref<8x64xf32, #tpu.memory_space<vmem>>, vector<8x32xf32>
    %5 = arith.addf %4, %0 : vector<8x32xf32>
    %c0_6 = arith.constant 0 : index
    %c32_7 = arith.constant 32 : index
    %6 = vector.load %arg3[%c0_6, %c32_7] : memref<8x64xf32, #tpu.memory_space<vmem>>, vector<8x32xf32>
    tpu.vector_store %arg3[%c0_6, %c32_7], %5 {strides = array<i32>} : memref<8x64xf32, #tpu.memory_space<vmem>>, vector<8x32xf32>,
    return
  }
  func.func @transform_0(%arg0: i32) -> (i32, i32) {
    %c0_i32 = arith.constant 0 : i32
    %c0_i32_0 = arith.constant 0 : i32
    return %arg0, %c0_i32 : i32, i32
  }
  func.func @transform_1(%arg0: i32) -> (i32, i32) {
    %c0_i32 = arith.constant 0 : i32
    %c0_i32_0 = arith.constant 0 : i32
    return %arg0, %c0_i32 : i32, i32
  }
  func.func @transform_2(%arg0: i32) -> (i32, i32) {
    %c0_i32 = arith.constant 0 : i32
    %c0_i32_0 = arith.constant 0 : i32
    return %arg0, %c0_i32 : i32, i32
  }
}

</mosaic_0001>

<llo_original>
// kernel: tpu_custom_call.1
$region0: #{tpu_custom_call.1}
  #allocation0 [shape = 'u32[]', space=smem, size = 0x4, offset = 0x4, fixed_abs, tag = 'smem constant byte address 0x4 - core index']
  #allocation1 [shape = 'u32[144,128]{1,0:T(1,128)}', space=vmem, size = 0x12000, scoped, tag = 'internal scratch']
  %s0 = inlined_call_operand.hbm [shape: f32[8,64], index: 0, kind: input, shape index: {}, may-alias: {0,2}]
  %s1 = inlined_call_operand.vmem [shape: f32[8,32], index: 1, kind: input, shape index: {}]
  %s2 = inlined_call_operand.hbm [shape: f32[8,64], index: 2, kind: output, shape index: {}, may-alias: {0,2}]
  %s3 = sld [smem:[#allocation0]]
  $region22: #{tpu_custom_call.1} parent=0
    _
  %s5 = ssub.s32 1, %s3
  %s6 = scalar_select 0, %s5, %s3
  $region1: #{tpu_custom_call.1} parent=0
    #allocation2 [shape = 'u8[4096]{0}', space=vmem, size = 0x1000, scoped, tag = 'input window, operand 0, single buffered']
    #allocation3 [shape = 's32[1]{0}', space=sflag, size = 0x4, scoped, tag = 'scoped memory for tpu_custom_call.1']
    #allocation4 [shape = 's32[1]{0}', space=sflag, size = 0x4, scoped, tag = 'scoped memory for tpu_custom_call.1']
    #allocation5 [shape = 'u8[4096]{0}', space=vmem, size = 0x1000, scoped, tag = 'output window, operand 0, single buffered']
    %7 = vsyncpa [#allocation3], 0
    %8 = vsyncpa [#allocation4], 0
    // Predicated region
    $region2: #{tpu_custom_call.1} parent=1 // pred_check
      _
    $region3: #{tpu_custom_call.1} parent=1 // pred_check_branch
      %10 = sbr.rel (0) target = $region5
    $region4: #{tpu_custom_call.1} parent=1 // pred_region
      %s12 = ssub.s32 128, 128
      %13 = vsyncadd [#allocation3], %s12
      %s15 = sshll.u32 [#allocation2], 4
      %s16 = int_to_ptr.vmem [resolvable:$true] %s15
      %18 = dma.hbm_to_vmem [thread:$0]  %s0, 128, %s16, [#allocation3]
    $region5: #{tpu_custom_call.1} parent=1 // pred_fallthru
      _
    // Predicated region
    $region6: #{tpu_custom_call.1} parent=1 // pred_check
      _
    $region7: #{tpu_custom_call.1} parent=1 // pred_check_branch
      %20 = sbr.rel (0) target = $region9
    $region8: #{tpu_custom_call.1} parent=1 // pred_region
      _
    $region9: #{tpu_custom_call.1} parent=1 // pred_fallthru
      _
    // Predicated region
    $region10: #{tpu_custom_call.1} parent=1 // pred_check
      _
    $region11: #{tpu_custom_call.1} parent=1 // pred_check_branch
      %22 = sbr.rel (0) target = $region13
    $region12: #{tpu_custom_call.1} parent=1 // pred_region
      %23 = dma.done [#allocation3], 128
    $region13: #{tpu_custom_call.1} parent=1 // pred_fallthru
      _
    %v24 = vld [vmem:[%s1] sm:$0xff]
    %v25 = vld [vmem:[#allocation2] sm:$0xff]
    %v26 = vadd.f32 %v25, %v24
    %vm27 = vcmask 261120
    %28 = vst.msk [vmem:[#allocation5] sm:$0xff] %vm27, %v26
    %v29 = vld [vmem:[#allocation2] sm:$0xff]
    %31 = vrot.lane.b32.xlu0 %v24, 32
    %v32 = vpop.permute.xlu0 %31
    %v34 = vadd.f32 %v29, %v32
    %vm35 = vcmask 523520
    %36 = vst.msk [vmem:[#allocation5] sm:$0xff] %vm35, %v34
    // Predicated region
    $region14: #{tpu_custom_call.1} parent=1 // pred_check
      _
    $region15: #{tpu_custom_call.1} parent=1 // pred_check_branch
      %38 = sbr.rel (0) target = $region17
    $region16: #{tpu_custom_call.1} parent=1 // pred_region
      %s40 = ssub.s32 128, 128
      %41 = vsyncadd [#allocation4], %s40
      %s43 = sshll.u32 [#allocation5], 4
      %s44 = int_to_ptr.vmem [resolvable:$true] %s43
      %46 = dma.vmem_to_hbm [thread:$0]  %s44, 128, %s2, [#allocation4]
    $region17: #{tpu_custom_call.1} parent=1 // pred_fallthru
      _
    // Predicated region
    $region18: #{tpu_custom_call.1} parent=1 // pred_check
      _
    $region19: #{tpu_custom_call.1} parent=1 // pred_check_branch
      %48 = sbr.rel (0) target = $region21
    $region20: #{tpu_custom_call.1} parent=1 // pred_region
      %49 = dma.done [#allocation4], 128
    $region21: #{tpu_custom_call.1} parent=1 // pred_fallthru
      _
    %50 = vsyncpa [#allocation3], 1
    %51 = vsyncpa [#allocation4], 1

</llo_original>
